<compile_context>
chip_gen: v6e
topology: v6e:2x2x1
jax: 0.10.0
libtpu: 0.0.40
codegen_flags: <defaults>
</compile_context>

<pallas_src>
import jax
import jax.numpy as jnp
import numpy as np
from jax import lax
from jax.experimental import pallas as pl
from jax.experimental.pallas import tpu as pltpu

_MAX_BLOCK_B = 256  # batch rows per grid step (fills the v6e/v7x 256-wide MXU M dim)


# ------------------------------ fused kernel --------------------------------
def _dqn_kernel(x_ref, w1_ref, b1_ref, w2_ref, b2_ref,
                wf1_ref, bf1_ref, wf2_ref, bf2_ref, o_ref):
    """Whole DQN forward on one batch block; 4 chained MXU matmuls.

    x_ref:   (block_b, 48)   batch-major NCHW-flattened input (col = c*16 + h*4 + w)
    w1_ref:  (48, 256)       conv1 lowered to a dense linear map (padding folded in)
    w2_ref:  (256, 512)      conv2 lowered to a dense linear map
    wf1_ref: (512, 128)      fc1 weights (transposed; column order already matches)
    wf2_ref: (128, 128)      fc2 weights transposed, zero-padded to 128 lanes
    b*_ref:  (1, N) f32      biases (conv biases repeated over the 16 positions)
    o_ref:   (block_b, 128)  lane-dense output (first 4 columns are the Q-values)
    """
    mxu_dtype = w1_ref.dtype

    # conv1 + ReLU  (one K=48 matmul, f32 accumulation, f32 bias/ReLU)
    h = jnp.dot(x_ref[...], w1_ref[...], preferred_element_type=jnp.float32)
    h = jnp.maximum(h + b1_ref[...], 0.0).astype(mxu_dtype)          # (block_b, 256)

    # conv2 + ReLU  (one K=256 matmul)
    h = jnp.dot(h, w2_ref[...], preferred_element_type=jnp.float32)
    h = jnp.maximum(h + b2_ref[...], 0.0).astype(mxu_dtype)          # (block_b, 512)

    # fc1 + ReLU    (single K=512 matmul; NCHW flatten is the column layout already)
    h = jnp.dot(h, wf1_ref[...], preferred_element_type=jnp.float32)
    h = jnp.maximum(h + bf1_ref[...], 0.0).astype(mxu_dtype)         # (block_b, 128)

    # fc2           (K=128; output padded to 128 lanes -> unmasked store)
    out = jnp.dot(h, wf2_ref[...], preferred_element_type=jnp.float32) + bf2_ref[...]
    o_ref[...] = out.astype(o_ref.dtype)


# ------------------------------ host helpers --------------------------------
def _conv_to_dense(w_oihw, H=4, W=4):
    """Lower a 3x3 'same' conv on an HxW grid to a dense (Cin*H*W, Cout*H*W) matrix.

    Column/row index layout is c*(H*W) + h*W + w (PyTorch NCHW flatten order).
    Padding / boundary masking is folded in as zero entries.
    """
    w = np.asarray(w_oihw, np.float32)               # (Cout, Cin, 3, 3)
    cout, cin, KH, KW = w.shape
    dense = np.zeros((cin, H * W, cout, H * W), np.float32)
    for kh in range(KH):
        for kw in range(KW):
            tap = w[:, :, kh, kw].T                  # (Cin, Cout)
            for ho in range(H):
                hi = ho + kh - 1
                if not (0 <= hi < H):
                    continue
                for wo in range(W):
                    wi = wo + kw - 1
                    if not (0 <= wi < W):
                        continue
                    dense[:, hi * W + wi, :, ho * W + wo] = tap
    return dense.reshape(cin * H * W, cout * H * W)


def init_params(key):
    """Deterministic parameter init mirroring the PyTorch module's shapes/layouts."""
    ks = jax.random.split(key, 8)

    def u(k, shape, fan_in):
        bound = 1.0 / jnp.sqrt(fan_in)
        return jax.random.uniform(k, shape, jnp.float32, -bound, bound)

    return {
        # PyTorch conv weight layout: (C_out, C_in, KH, KW)
        "conv1_w": u(ks[0], (16, 3, 3, 3), 3 * 9),
        "conv1_b": u(ks[1], (16,), 3 * 9),
        "conv2_w": u(ks[2], (32, 16, 3, 3), 16 * 9),
        "conv2_b": u(ks[3], (32,), 16 * 9),
        # PyTorch linear weight layout: (out_features, in_features)
        "fc1_w": u(ks[4], (128, 32 * 4 * 4), 32 * 4 * 4),
        "fc1_b": u(ks[5], (128,), 32 * 4 * 4),
        "fc2_w": u(ks[6], (4, 128), 128),
        "fc2_b": u(ks[7], (4,), 128),
    }


def prepare_params(p, mxu_dtype=jnp.bfloat16):
    """One-time re-layout of PyTorch-style params into the kernel's layouts.

    MXU operands (the 4 weight matrices) are stored in `mxu_dtype` (bf16 on
    v6e/v7x, f32 if exact numerics are required); biases stay f32 because the
    bias-add / ReLU path is f32.
    """
    w1 = _conv_to_dense(p["conv1_w"])                           # (48, 256)
    w2 = _conv_to_dense(p["conv2_w"])                           # (256, 512)
    wf1 = np.asarray(p["fc1_w"], np.float32).T                  # (512, 128)
    wf2 = np.zeros((128, 128), np.float32)                      # lane-dense fc2
    wf2[:, :4] = np.asarray(p["fc2_w"], np.float32).T
    bf2 = np.zeros((1, 128), np.float32)
    bf2[0, :4] = np.asarray(p["fc2_b"], np.float32)
    return {
        "w1": jnp.asarray(w1, mxu_dtype),
        "b1": jnp.asarray(np.repeat(np.asarray(p["conv1_b"], np.float32), 16)[None, :]),
        "w2": jnp.asarray(w2, mxu_dtype),
        "b2": jnp.asarray(np.repeat(np.asarray(p["conv2_b"], np.float32), 16)[None, :]),
        "wf1": jnp.asarray(wf1, mxu_dtype),
        "bf1": jnp.asarray(np.asarray(p["fc1_b"], np.float32)[None, :]),
        "wf2": jnp.asarray(wf2, mxu_dtype),
        "bf2": jnp.asarray(bf2),
    }


def dqn_forward(prepared, x_nchw):
    """Single fused Pallas forward; x_nchw is (B, 3, 4, 4) like the PyTorch module."""
    B = x_nchw.shape[0]
    assert x_nchw.shape[1:] == (3, 4, 4)
    mxu_dtype = prepared["w1"].dtype

    # Batch tiling: one grid step per block_b rows; "parallel" so v7x's two
    # TensorCores can split the batch.  (Batch >= 128 per call amortizes the
    # per-kernel dispatch / MXU-push latency -- caller's choice.)
    if B <= _MAX_BLOCK_B:
        block_b = max(8, ((B + 7) // 8) * 8)
        bpad = block_b
    else:
        block_b = _MAX_BLOCK_B
        bpad = ((B + block_b - 1) // block_b) * block_b

    # NCHW flatten (col = c*16 + h*4 + w) -> batch-major rows, padded to bpad.
    x2d = x_nchw.reshape(B, 48).astype(mxu_dtype)
    if bpad != B:
        x2d = jnp.pad(x2d, ((0, bpad - B), (0, 0)))

    full = lambda i: (0, 0)  # weights/biases: constant block -> not re-fetched
    out = pl.pallas_call(
        _dqn_kernel,
        out_shape=jax.ShapeDtypeStruct((bpad, 128), jnp.float32),
        grid=(bpad // block_b,),
        in_specs=[
            pl.BlockSpec((block_b, 48), lambda i: (i, 0)),
            pl.BlockSpec((48, 256), full), pl.BlockSpec((1, 256), full),
            pl.BlockSpec((256, 512), full), pl.BlockSpec((1, 512), full),
            pl.BlockSpec((512, 128), full), pl.BlockSpec((1, 128), full),
            pl.BlockSpec((128, 128), full), pl.BlockSpec((1, 128), full),
        ],
        out_specs=pl.BlockSpec((block_b, 128), lambda i: (i, 0)),
        compiler_params=pltpu.CompilerParams(dimension_semantics=("parallel",)),
    )(x2d, prepared["w1"], prepared["b1"], prepared["w2"], prepared["b2"],
      prepared["wf1"], prepared["bf1"], prepared["wf2"], prepared["bf2"])
    return out[:B, :4]


# ------------------------- plain-JAX reference (check) ----------------------
def _reference_forward(params, x):
    dn = ("NCHW", "OIHW", "NCHW")
    h1 = jax.nn.relu(
        lax.conv_general_dilated(x, params["conv1_w"], (1, 1), "SAME",
                                 dimension_numbers=dn)
        + params["conv1_b"][None, :, None, None])
    h2 = jax.nn.relu(
        lax.conv_general_dilated(h1, params["conv2_w"], (1, 1), "SAME",
                                 dimension_numbers=dn)
        + params["conv2_b"][None, :, None, None])
    flat = h2.reshape(x.shape[0], -1)
    h3 = jax.nn.relu(flat @ params["fc1_w"].T + params["fc1_b"])
    return h3 @ params["fc2_w"].T + params["fc2_b"]


# --------------------------------- main --------------------------------------
if __name__ == "__main__":
    key = jax.random.PRNGKey(0)
    k_params, k_x = jax.random.split(key)
    params = init_params(k_params)

    # batch=2, channels=3, spatial=4 (implied by fc1 = Linear(32*4*4, 128))
    x = jax.random.normal(k_x, (2, 3, 4, 4), dtype=jnp.float32)

    fwd = jax.jit(dqn_forward)
    ref = _reference_forward(params, x)

    # 1) Strict all-f32 path: tight tolerance catches any layout/permutation bug.
    prep_f32 = prepare_params(params, mxu_dtype=jnp.float32)
    q_f32 = fwd(prep_f32, x)
    jax.block_until_ready(q_f32)
    assert q_f32.shape == (2, 4)
    np.testing.assert_allclose(np.asarray(q_f32), np.asarray(ref),
                               rtol=1e-4, atol=1e-4)

    # 2) bf16 MXU-operand fast path (v6e/v7x), f32 accumulation + f32 bias/ReLU.
    prep_bf16 = prepare_params(params, mxu_dtype=jnp.bfloat16)
    q_bf16 = fwd(prep_bf16, x)
    jax.block_until_ready(q_bf16)
    assert q_bf16.shape == (2, 4)
    np.testing.assert_allclose(np.asarray(q_bf16), np.asarray(ref),
                               rtol=5e-2, atol=5e-2)

    print("KERNEL_OK")
</pallas_src>

<mosaic_0001>
module attributes {stable_mosaic.version = 11 : i64} {
  func.func @_dqn_kernel(%arg0: i32, %arg1: memref<8x48xf32, #tpu.memory_space<vmem>>, %arg2: memref<48x256xf32, #tpu.memory_space<vmem>>, %arg3: memref<1x256xf32, #tpu.memory_space<vmem>>, %arg4: memref<256x512xf32, #tpu.memory_space<vmem>>, %arg5: memref<1x512xf32, #tpu.memory_space<vmem>>, %arg6: memref<512x128xf32, #tpu.memory_space<vmem>>, %arg7: memref<1x128xf32, #tpu.memory_space<vmem>>, %arg8: memref<128x128xf32, #tpu.memory_space<vmem>>, %arg9: memref<1x128xf32, #tpu.memory_space<vmem>>, %arg10: memref<8x128xf32, #tpu.memory_space<vmem>>) attributes {dimension_semantics = [#tpu.dimension_semantics<parallel>], iteration_bounds = array<i64: 1>, scalar_prefetch = 0 : i64, scratch_operands = 0 : i64, tpu.core_type = #tpu.core_type<tc>, window_params = [{transform_indices = @transform_0, window_bounds = array<i64: 8, 48>}, {pipeline_mode = #tpu.pipeline_mode<synchronous>, transform_indices = @transform_1, window_bounds = array<i64: 48, 256>}, {pipeline_mode = #tpu.pipeline_mode<synchronous>, transform_indices = @transform_2, window_bounds = array<i64: 1, 256>}, {pipeline_mode = #tpu.pipeline_mode<synchronous>, transform_indices = @transform_3, window_bounds = array<i64: 256, 512>}, {pipeline_mode = #tpu.pipeline_mode<synchronous>, transform_indices = @transform_4, window_bounds = array<i64: 1, 512>}, {pipeline_mode = #tpu.pipeline_mode<synchronous>, transform_indices = @transform_5, window_bounds = array<i64: 512, 128>}, {pipeline_mode = #tpu.pipeline_mode<synchronous>, transform_indices = @transform_6, window_bounds = array<i64: 1, 128>}, {pipeline_mode = #tpu.pipeline_mode<synchronous>, transform_indices = @transform_7, window_bounds = array<i64: 128, 128>}, {pipeline_mode = #tpu.pipeline_mode<synchronous>, transform_indices = @transform_8, window_bounds = array<i64: 1, 128>}, {transform_indices = @transform_9, window_bounds = array<i64: 8, 128>}]} {
    %c0 = arith.constant 0 : index
    %c0_0 = arith.constant 0 : index
    %0 = vector.load %arg1[%c0, %c0_0] : memref<8x48xf32, #tpu.memory_space<vmem>>, vector<8x48xf32>
    %c0_1 = arith.constant 0 : index
    %c0_2 = arith.constant 0 : index
    %1 = vector.load %arg2[%c0_1, %c0_2] : memref<48x256xf32, #tpu.memory_space<vmem>>, vector<48x256xf32>
    %cst = arith.constant dense<0.000000e+00> : vector<8x256xf32>
    %2 = tpu.matmul %0, %1, %cst {dimension_numbers = #tpu.dot_dimension_numbers<[1], [0], [0], [1], [0, 0, 1, 1], [], []>} : vector<8x48xf32>, vector<48x256xf32>, vector<8x256xf32> -> vector<8x256xf32>
    %c0_3 = arith.constant 0 : index
    %c0_4 = arith.constant 0 : index
    %3 = vector.load %arg3[%c0_3, %c0_4] : memref<1x256xf32, #tpu.memory_space<vmem>>, vector<1x256xf32>
    %4 = vector.broadcast %3 : vector<1x256xf32> to vector<8x256xf32>
    %5 = arith.addf %2, %4 : vector<8x256xf32>
    %cst_5 = arith.constant 0.000000e+00 : f32
    %6 = vector.broadcast %cst_5 : f32 to vector<8x256xf32>
    %7 = arith.maximumf %5, %6 : vector<8x256xf32>
    %c0_6 = arith.constant 0 : index
    %c0_7 = arith.constant 0 : index
    %8 = vector.load %arg4[%c0_6, %c0_7] : memref<256x512xf32, #tpu.memory_space<vmem>>, vector<256x512xf32>
    %cst_8 = arith.constant dense<0.000000e+00> : vector<8x512xf32>
    %9 = tpu.matmul %7, %8, %cst_8 {dimension_numbers = #tpu.dot_dimension_numbers<[1], [0], [0], [1], [0, 0, 1, 1], [], []>} : vector<8x256xf32>, vector<256x512xf32>, vector<8x512xf32> -> vector<8x512xf32>
    %c0_9 = arith.constant 0 : index
    %c0_10 = arith.constant 0 : index
    %10 = vector.load %arg5[%c0_9, %c0_10] : memref<1x512xf32, #tpu.memory_space<vmem>>, vector<1x512xf32>
    %11 = vector.broadcast %10 : vector<1x512xf32> to vector<8x512xf32>
    %12 = arith.addf %9, %11 : vector<8x512xf32>
    %cst_11 = arith.constant 0.000000e+00 : f32
    %13 = vector.broadcast %cst_11 : f32 to vector<8x512xf32>
    %14 = arith.maximumf %12, %13 : vector<8x512xf32>
    %c0_12 = arith.constant 0 : index
    %c0_13 = arith.constant 0 : index
    %15 = vector.load %arg6[%c0_12, %c0_13] : memref<512x128xf32, #tpu.memory_space<vmem>>, vector<512x128xf32>
    %cst_14 = arith.constant dense<0.000000e+00> : vector<8x128xf32>
    %16 = tpu.matmul %14, %15, %cst_14 {dimension_numbers = #tpu.dot_dimension_numbers<[1], [0], [0], [1], [0, 0, 1, 1], [], []>} : vector<8x512xf32>, vector<512x128xf32>, vector<8x128xf32> -> vector<8x128xf32>
    %c0_15 = arith.constant 0 : index
    %c0_16 = arith.constant 0 : index
    %17 = vector.load %arg7[%c0_15, %c0_16] : memref<1x128xf32, #tpu.memory_space<vmem>>, vector<1x128xf32>
    %18 = vector.broadcast %17 : vector<1x128xf32> to vector<8x128xf32>
    %19 = arith.addf %16, %18 : vector<8x128xf32>
    %cst_17 = arith.constant 0.000000e+00 : f32
    %20 = vector.broadcast %cst_17 : f32 to vector<8x128xf32>
    %21 = arith.maximumf %19, %20 : vector<8x128xf32>
    %c0_18 = arith.constant 0 : index
    %c0_19 = arith.constant 0 : index
    %22 = vector.load %arg8[%c0_18, %c0_19] : memref<128x128xf32, #tpu.memory_space<vmem>>, vector<128x128xf32>
    %cst_20 = arith.constant dense<0.000000e+00> : vector<8x128xf32>
    %23 = tpu.matmul %21, %22, %cst_20 {dimension_numbers = #tpu.dot_dimension_numbers<[1], [0], [0], [1], [0, 0, 1, 1], [], []>} : vector<8x128xf32>, vector<128x128xf32>, vector<8x128xf32> -> vector<8x128xf32>
    %c0_21 = arith.constant 0 : index
    %c0_22 = arith.constant 0 : index
    %24 = vector.load %arg9[%c0_21, %c0_22] : memref<1x128xf32, #tpu.memory_space<vmem>>, vector<1x128xf32>
    %25 = vector.broadcast %24 : vector<1x128xf32> to vector<8x128xf32>
    %26 = arith.addf %23, %25 : vector<8x128xf32>
    %c0_23 = arith.constant 0 : index
    %c0_24 = arith.constant 0 : index
    %27 = vector.load %arg10[%c0_23, %c0_24] : memref<8x128xf32, #tpu.memory_space<vmem>>, vector<8x128xf32>
    tpu.vector_store %arg10[%c0_23, %c0_24], %26 {strides = array<i32>} : memref<8x128xf32, #tpu.memory_space<vmem>>, vector<8x128xf32>,
    return
  }
  func.func @transform_0(%arg0: i32) -> (i32, i32) {
    %c0_i32 = arith.constant 0 : i32
    %c0_i32_0 = arith.constant 0 : i32
    return %arg0, %c0_i32 : i32, i32
  }
  func.func @transform_1(%arg0: i32) -> (i32, i32) {
    %c0_i32 = arith.constant 0 : i32
    %c0_i32_0 = arith.constant 0 : i32
    %c0_i32_1 = arith.constant 0 : i32
    return %c0_i32, %c0_i32_0 : i32, i32
  }
  func.func @transform_2(%arg0: i32) -> (i32, i32) {
    %c0_i32 = arith.constant 0 : i32
    %c0_i32_0 = arith.constant 0 : i32
    %c0_i32_1 = arith.constant 0 : i32
    return %c0_i32, %c0_i32_0 : i32, i32
  }
  func.func @transform_3(%arg0: i32) -> (i32, i32) {
    %c0_i32 = arith.constant 0 : i32
    %c0_i32_0 = arith.constant 0 : i32
    %c0_i32_1 = arith.constant 0 : i32
    return %c0_i32, %c0_i32_0 : i32, i32
  }
  func.func @transform_4(%arg0: i32) -> (i32, i32) {
    %c0_i32 = arith.constant 0 : i32
    %c0_i32_0 = arith.constant 0 : i32
    %c0_i32_1 = arith.constant 0 : i32
    return %c0_i32, %c0_i32_0 : i32, i32
  }
  func.func @transform_5(%arg0: i32) -> (i32, i32) {
    %c0_i32 = arith.constant 0 : i32
    %c0_i32_0 = arith.constant 0 : i32
    %c0_i32_1 = arith.constant 0 : i32
    return %c0_i32, %c0_i32_0 : i32, i32
  }
  func.func @transform_6(%arg0: i32) -> (i32, i32) {
    %c0_i32 = arith.constant 0 : i32
    %c0_i32_0 = arith.constant 0 : i32
    %c0_i32_1 = arith.constant 0 : i32
    return %c0_i32, %c0_i32_0 : i32, i32
  }
  func.func @transform_7(%arg0: i32) -> (i32, i32) {
    %c0_i32 = arith.constant 0 : i32
    %c0_i32_0 = arith.constant 0 : i32
    %c0_i32_1 = arith.constant 0 : i32
    return %c0_i32, %c0_i32_0 : i32, i32
  }
  func.func @transform_8(%arg0: i32) -> (i32, i32) {
    %c0_i32 = arith.constant 0 : i32
    %c0_i32_0 = arith.constant 0 : i32
    %c0_i32_1 = arith.constant 0 : i32
    return %c0_i32, %c0_i32_0 : i32, i32
  }
  func.func @transform_9(%arg0: i32) -> (i32, i32) {
    %c0_i32 = arith.constant 0 : i32
    %c0_i32_0 = arith.constant 0 : i32
    return %arg0, %c0_i32 : i32, i32
  }
}

</mosaic_0001>

<llo_original>
// kernel: dqn_forward.1
$region0: #{dqn_forward.1}
  #allocation0 [shape = 'u32[]', space=smem, size = 0x4, offset = 0x4, fixed_abs, tag = 'smem constant byte address 0x4 - core index']
  #allocation1 [shape = 'u32[144,128]{1,0:T(1,128)}', space=vmem, size = 0x12000, scoped, tag = 'internal scratch']
  %s0 = inlined_call_operand.vmem [shape: f32[8,48], index: 0, kind: input, shape index: {}]
  %s1 = inlined_call_operand.hbm [shape: f32[48,256], index: 1, kind: input, shape index: {}]
  %s2 = inlined_call_operand.vmem [shape: f32[1,256], index: 2, kind: input, shape index: {}]
  %s3 = inlined_call_operand.hbm [shape: f32[256,512], index: 3, kind: input, shape index: {}]
  %s4 = inlined_call_operand.vmem [shape: f32[1,512], index: 4, kind: input, shape index: {}]
  %s5 = inlined_call_operand.hbm [shape: f32[512,128], index: 5, kind: input, shape index: {}]
  %s6 = inlined_call_operand.vmem [shape: f32[1,128], index: 6, kind: input, shape index: {}]
  %s7 = inlined_call_operand.hbm [shape: f32[128,128], index: 7, kind: input, shape index: {}]
  %s8 = inlined_call_operand.vmem [shape: f32[1,128], index: 8, kind: input, shape index: {}]
  %s9 = inlined_call_operand.vmem [shape: f32[8,128], index: 9, kind: output, shape index: {}]
  %s10 = sld [smem:[#allocation0]]
  $region62: #{dqn_forward.1} parent=0
    _
  %s12 = ssub.s32 1, %s10
  %s13 = scalar_select 0, %s12, %s10
  $region1: #{dqn_forward.1} parent=0
    #allocation2 [shape = 'u8[49152]{0}', space=vmem, size = 0xc000, scoped, tag = 'input window, operand 1, single buffered']
    #allocation3 [shape = 's32[1]{0}', space=sflag, size = 0x4, scoped, tag = 'scoped memory for dqn_forward.1']
    #allocation4 [shape = 'u8[524288]{0}', space=vmem, size = 0x80000, scoped, tag = 'input window, operand 3, single buffered']
    #allocation5 [shape = 's32[1]{0}', space=sflag, size = 0x4, scoped, tag = 'scoped memory for dqn_forward.1']
    #allocation6 [shape = 'u8[262144]{0}', space=vmem, size = 0x40000, scoped, tag = 'input window, operand 5, single buffered']
    #allocation7 [shape = 'u8[65536]{0}', space=vmem, size = 0x10000, scoped, tag = 'input window, operand 7, single buffered']
    #allocation8 [shape = 's32[1]{0}', space=sflag, size = 0x4, scoped, tag = 'scoped memory for dqn_forward.1']
    %14 = vsyncpa [#allocation3], 0
    %15 = vsyncpa [#allocation5], 0
    %16 = vsyncpa [#allocation8], 0
    // Predicated region
    $region2: #{dqn_forward.1} parent=1 // pred_check
      _
    $region3: #{dqn_forward.1} parent=1 // pred_check_branch
      %18 = sbr.rel (0) target = $region5
    $region4: #{dqn_forward.1} parent=1 // pred_region
      _
    $region5: #{dqn_forward.1} parent=1 // pred_fallthru
      _
    // Predicated region
    $region6: #{dqn_forward.1} parent=1 // pred_check
      _
    $region7: #{dqn_forward.1} parent=1 // pred_check_branch
      %20 = sbr.rel (0) target = $region9
    $region8: #{dqn_forward.1} parent=1 // pred_region
      %s22 = ssub.s32 1536, 1536
      %23 = vsyncadd [#allocation3], %s22
      %s24 = sshll.u32 [#allocation2], 4
      %s25 = int_to_ptr.vmem [resolvable:$true] %s24
      %30 = dma.hbm_to_vmem [thread:$0]  %s1, 1536, %s25, [#allocation3], 256, 256, 16
    $region9: #{dqn_forward.1} parent=1 // pred_fallthru
      _
    // Predicated region
    $region10: #{dqn_forward.1} parent=1 // pred_check
      _
    $region11: #{dqn_forward.1} parent=1 // pred_check_branch
      %32 = sbr.rel (0) target = $region13
    $region12: #{dqn_forward.1} parent=1 // pred_region
      _
    $region13: #{dqn_forward.1} parent=1 // pred_fallthru
      _
    // Predicated region
    $region14: #{dqn_forward.1} parent=1 // pred_check
      _
    $region15: #{dqn_forward.1} parent=1 // pred_check_branch
      %34 = sbr.rel (0) target = $region17
    $region16: #{dqn_forward.1} parent=1 // pred_region
      %s36 = ssub.s32 16384, 16384
      %37 = vsyncadd [#allocation5], %s36
      %s38 = sshll.u32 [#allocation4], 4
      %s39 = int_to_ptr.vmem [resolvable:$true] %s38
      %44 = dma.hbm_to_vmem [thread:$0]  %s3, 16384, %s39, [#allocation5], 512, 512, 32
    $region17: #{dqn_forward.1} parent=1 // pred_fallthru
      _
    // Predicated region
    $region18: #{dqn_forward.1} parent=1 // pred_check
      _
    $region19: #{dqn_forward.1} parent=1 // pred_check_branch
      %46 = sbr.rel (0) target = $region21
    $region20: #{dqn_forward.1} parent=1 // pred_region
      _
    $region21: #{dqn_forward.1} parent=1 // pred_fallthru
      _
    // Predicated region
    $region22: #{dqn_forward.1} parent=1 // pred_check
      _
    $region23: #{dqn_forward.1} parent=1 // pred_check_branch
      %48 = sbr.rel (0) target = $region25
    $region24: #{dqn_forward.1} parent=1 // pred_region
      %s50 = ssub.s32 8192, 8192
      %51 = vsyncadd [#allocation5], %s50
      %s52 = sshll.u32 [#allocation6], 4
      %s53 = int_to_ptr.vmem [resolvable:$true] %s52
      %58 = dma.hbm_to_vmem [thread:$0]  %s5, 8192, %s53, [#allocation5], 128, 128, 8
    $region25: #{dqn_forward.1} parent=1 // pred_fallthru
      _
    // Predicated region
    $region26: #{dqn_forward.1} parent=1 // pred_check
      _
    $region27: #{dqn_forward.1} parent=1 // pred_check_branch
      %60 = sbr.rel (0) target = $region29
    $region28: #{dqn_forward.1} parent=1 // pred_region
      _
    $region29: #{dqn_forward.1} parent=1 // pred_fallthru
      _
    // Predicated region
    $region30: #{dqn_forward.1} parent=1 // pred_check
      _
    $region31: #{dqn_forward.1} parent=1 // pred_check_branch
      %62 = sbr.rel (0) target = $region33
    $region32: #{dqn_forward.1} parent=1 // pred_region
      %s64 = ssub.s32 2048, 2048
      %65 = vsyncadd [#allocation8], %s64
      %s66 = sshll.u32 [#allocation7], 4
      %s67 = int_to_ptr.vmem [resolvable:$true] %s66
      %72 = dma.hbm_to_vmem [thread:$0]  %s7, 2048, %s67, [#allocation8], 128, 128, 8
    $region33: #{dqn_forward.1} parent=1 // pred_fallthru
      _
    // Predicated region
    $region34: #{dqn_forward.1} parent=1 // pred_check
      _
    $region35: #{dqn_forward.1} parent=1 // pred_check_branch
      %74 = sbr.rel (0) target = $region37
    $region36: #{dqn_forward.1} parent=1 // pred_region
      _
    $region37: #{dqn_forward.1} parent=1 // pred_fallthru
      _
    // Predicated region
    $region38: #{dqn_forward.1} parent=1 // pred_check
      _
    $region39: #{dqn_forward.1} parent=1 // pred_check_branch
      %76 = sbr.rel (0) target = $region41
    $region40: #{dqn_forward.1} parent=1 // pred_region
      %77 = dma.done [#allocation3], 1536
    $region41: #{dqn_forward.1} parent=1 // pred_fallthru
      _
    // Predicated region
    $region42: #{dqn_forward.1} parent=1 // pred_check
      _
    $region43: #{dqn_forward.1} parent=1 // pred_check_branch
      %79 = sbr.rel (0) target = $region45
    $region44: #{dqn_forward.1} parent=1 // pred_region
      %80 = dma.done [#allocation5], 16384
    $region45: #{dqn_forward.1} parent=1 // pred_fallthru
      _
    // Predicated region
    $region46: #{dqn_forward.1} parent=1 // pred_check
      _
    $region47: #{dqn_forward.1} parent=1 // pred_check_branch
      %82 = sbr.rel (0) target = $region49
    $region48: #{dqn_forward.1} parent=1 // pred_region
      %83 = dma.done [#allocation5], 8192
    $region49: #{dqn_forward.1} parent=1 // pred_fallthru
      _
    // Predicated region
    $region50: #{dqn_forward.1} parent=1 // pred_check
      _
    $region51: #{dqn_forward.1} parent=1 // pred_check_branch
      %85 = sbr.rel (0) target = $region53
    $region52: #{dqn_forward.1} parent=1 // pred_region
      %86 = dma.done [#allocation8], 2048
    $region53: #{dqn_forward.1} parent=1 // pred_fallthru
      _
    %v87 = vld [vmem:[%s0] sm:$0xff]
    %v88 = vld [vmem:[#allocation2] sm:$0xff]
    %v89 = vld [vmem:[#allocation2 + $0x8] sm:$0xff]
    %v90 = vld [vmem:[#allocation2 + $0x10] sm:$0xff]
    %v91 = vld [vmem:[#allocation2 + $0x18] sm:$0xff]
    %v92 = vld [vmem:[#allocation2 + $0x20] sm:$0xff]
    %v93 = vld [vmem:[#allocation2 + $0x28] sm:$0xff]
    %v94 = vld [vmem:[#allocation2 + $0x30] sm:$0xff]
    %v95 = vld [vmem:[#allocation2 + $0x38] sm:$0xff]
    %v96 = vld [vmem:[#allocation2 + $0x40] sm:$0xff]
    %v97 = vld [vmem:[#allocation2 + $0x48] sm:$0xff]
    %v98 = vld [vmem:[#allocation2 + $0x50] sm:$0xff]
    %v99 = vld [vmem:[#allocation2 + $0x58] sm:$0xff]
    %v100 = vld [vmem:[%s2] sm:$0x3]
    %v102 = vlaneseq
    %v103 = vshrl.u32 %v102, 7
    %v104 = vsub.s32 0, %v103
    %v105 = vrot.slane %v100, %v104
    %v106 = vlaneseq
    %v107 = vshrl.u32 %v106, 7
    %v108 = vsub.s32 1, %v107
    %v109 = vrot.slane %v100, %v108
    %vm112 = vcmask 392192
    %v114 = vsel %vm112, %v87, 0
    %116 = vmatprep.subr.mxu0 0.0
    %117 = vmatpush1.msra.mxu0 0.0
    %118 = vmatprep.subr.mxu0 0.0
    %119 = vmatpush1.msra.mxu0 0.0
    %120 = vmatprep.subr.mxu0 0.0
    %121 = vmatpush1.msra.mxu0 0.0
    %122 = vmatprep.subr.mxu0 0.0
    %123 = vmatpush1.msra.mxu0 0.0
    %124 = vmatprep.subr.mxu0 0.0
    %125 = vmatpush1.msra.mxu0 0.0
    %126 = vmatprep.subr.mxu0 0.0
    %127 = vmatpush1.msra.mxu0 0.0
    %128 = vmatprep.subr.mxu0 0.0
    %129 = vmatpush1.msra.mxu0 0.0
    %130 = vmatprep.subr.mxu0 0.0
    %131 = vmatpush1.msra.mxu0 0.0
    %132 = vmatprep.subr.mxu0 0.0
    %133 = vmatpush1.msra.mxu0 0.0
    %134 = vmatprep.subr.mxu0 0.0
    %135 = vmatpush1.msra.mxu0 0.0
    %136 = vmatprep.subr.mxu0 %v99
    %137 = vmatpush1.msra.mxu0 %v98
    %138 = vmatprep.subr.mxu0 %v97
    %139 = vmatpush1.msra.mxu0 %v96
    %140 = vmatprep.subr.mxu0 %v95
    %141 = vmatpush1.msra.mxu0 %v94
    %142 = vmatprep.subr.mxu0 %v93
    %143 = vmatpush1.msra.mxu0 %v92
    %144 = vmatprep.subr.mxu0 %v91
    %145 = vmatpush1.msra.mxu0 %v90
    %146 = vmatprep.subr.mxu0 %v89
    %147 = vmatpush1.msra.mxu0 %v88
    %148 = vmatprep.subr.mxu0 0.0
    %149 = vmatpush2.msra.mxu0 0.0
    %150 = vmatprep.subr.mxu0 0.0
    %151 = vmatpush2.msra.mxu0 0.0
    %152 = vmatprep.subr.mxu0 0.0
    %153 = vmatpush2.msra.mxu0 0.0
    %154 = vmatprep.subr.mxu0 0.0
    %155 = vmatpush2.msra.mxu0 0.0
    %156 = vmatprep.subr.mxu0 0.0
    %157 = vmatpush2.msra.mxu0 0.0
    %158 = vmatprep.subr.mxu0 0.0
    %159 = vmatpush2.msra.mxu0 0.0
    %160 = vmatprep.subr.mxu0 0.0
    %161 = vmatpush2.msra.mxu0 0.0
    %162 = vmatprep.subr.mxu0 0.0
    %163 = vmatpush2.msra.mxu0 0.0
    %164 = vmatprep.subr.mxu0 0.0
    %165 = vmatpush2.msra.mxu0 0.0
    %166 = vmatprep.subr.mxu0 0.0
    %167 = vmatpush2.msra.mxu0 0.0
    %168 = vmatprep.subr.mxu0 0.0
    %169 = vmatpush2.msra.mxu0 0.0
    %170 = vmatprep.subr.mxu0 0.0
    %171 = vmatpush2.msra.mxu0 0.0
    %172 = vmatprep.subr.mxu0 0.0
    %173 = vmatpush2.msra.mxu0 0.0
    %174 = vmatprep.subr.mxu0 0.0
    %175 = vmatpush2.msra.mxu0 0.0
    %176 = vmatprep.subr.mxu0 0.0
    %177 = vmatpush2.msra.mxu0 0.0
    %178 = vmatprep.subr.mxu0 0.0
    %179 = vmatpush2.msra.mxu0 0.0
    %180 = vmatprep.mubr.f32.mxu0 0.0
    %181 = vmatmul.mubr.f32.gmra.mxu0 %v114
    %v182 = vpop.f32.mrf.mxu0
    %v183 = vadd.f32 %v105, %v182
    %v184 = vpop.f32.mrf.mxu0
    %v185 = vadd.f32 %v109, %v184
    %186 = vdwg.mxu0
    %v187 = vmax.f32 %v183, 0.0
    %v188 = vmax.f32 %v185, 0.0
    %v189 = vld [vmem:[#allocation4] sm:$0xff]
    %v190 = vld [vmem:[#allocation4 + $0x8] sm:$0xff]
    %v191 = vld [vmem:[#allocation4 + $0x10] sm:$0xff]
    %v192 = vld [vmem:[#allocation4 + $0x18] sm:$0xff]
    %v193 = vld [vmem:[#allocation4 + $0x20] sm:$0xff]
    %v194 = vld [vmem:[#allocation4 + $0x28] sm:$0xff]
    %v195 = vld [vmem:[#allocation4 + $0x30] sm:$0xff]
    %v196 = vld [vmem:[#allocation4 + $0x38] sm:$0xff]
    %v197 = vld [vmem:[#allocation4 + $0x40] sm:$0xff]
    %v198 = vld [vmem:[#allocation4 + $0x48] sm:$0xff]
    %v199 = vld [vmem:[#allocation4 + $0x50] sm:$0xff]
    %v200 = vld [vmem:[#allocation4 + $0x58] sm:$0xff]
    %v201 = vld [vmem:[#allocation4 + $0x60] sm:$0xff]
    %v202 = vld [vmem:[#allocation4 + $0x68] sm:$0xff]
    %v203 = vld [vmem:[#allocation4 + $0x70] sm:$0xff]
    %v204 = vld [vmem:[#allocation4 + $0x78] sm:$0xff]
    %v205 = vld [vmem:[#allocation4 + $0x80] sm:$0xff]
    %v206 = vld [vmem:[#allocation4 + $0x88] sm:$0xff]
    %v207 = vld [vmem:[#allocation4 + $0x90] sm:$0xff]
    %v208 = vld [vmem:[#allocation4 + $0x98] sm:$0xff]
    %v209 = vld [vmem:[#allocation4 + $0xa0] sm:$0xff]
    %v210 = vld [vmem:[#allocation4 + $0xa8] sm:$0xff]
    %v211 = vld [vmem:[#allocation4 + $0xb0] sm:$0xff]
    %v212 = vld [vmem:[#allocation4 + $0xb8] sm:$0xff]
    %v213 = vld [vmem:[#allocation4 + $0xc0] sm:$0xff]
    %v214 = vld [vmem:[#allocation4 + $0xc8] sm:$0xff]
    %v215 = vld [vmem:[#allocation4 + $0xd0] sm:$0xff]
    %v216 = vld [vmem:[#allocation4 + $0xd8] sm:$0xff]
    %v217 = vld [vmem:[#allocation4 + $0xe0] sm:$0xff]
    %v218 = vld [vmem:[#allocation4 + $0xe8] sm:$0xff]
    %v219 = vld [vmem:[#allocation4 + $0xf0] sm:$0xff]
    %v220 = vld [vmem:[#allocation4 + $0xf8] sm:$0xff]
    %v221 = vld [vmem:[#allocation4 + $0x100] sm:$0xff]
    %v222 = vld [vmem:[#allocation4 + $0x108] sm:$0xff]
    %v223 = vld [vmem:[#allocation4 + $0x110] sm:$0xff]
    %v224 = vld [vmem:[#allocation4 + $0x118] sm:$0xff]
    %v225 = vld [vmem:[#allocation4 + $0x120] sm:$0xff]
    %v226 = vld [vmem:[#allocation4 + $0x128] sm:$0xff]
    %v227 = vld [vmem:[#allocation4 + $0x130] sm:$0xff]
    %v228 = vld [vmem:[#allocation4 + $0x138] sm:$0xff]
    %v229 = vld [vmem:[#allocation4 + $0x140] sm:$0xff]
    %v230 = vld [vmem:[#allocation4 + $0x148] sm:$0xff]
    %v231 = vld [vmem:[#allocation4 + $0x150] sm:$0xff]
    %v232 = vld [vmem:[#allocation4 + $0x158] sm:$0xff]
    %v233 = vld [vmem:[#allocation4 + $0x160] sm:$0xff]
    %v234 = vld [vmem:[#allocation4 + $0x168] sm:$0xff]
    %v235 = vld [vmem:[#allocation4 + $0x170] sm:$0xff]
    %v236 = vld [vmem:[#allocation4 + $0x178] sm:$0xff]
    %v237 = vld [vmem:[#allocation4 + $0x180] sm:$0xff]
    %v238 = vld [vmem:[#allocation4 + $0x188] sm:$0xff]
    %v239 = vld [vmem:[#allocation4 + $0x190] sm:$0xff]
    %v240 = vld [vmem:[#allocation4 + $0x198] sm:$0xff]
    %v241 = vld [vmem:[#allocation4 + $0x1a0] sm:$0xff]
    %v242 = vld [vmem:[#allocation4 + $0x1a8] sm:$0xff]
    %v243 = vld [vmem:[#allocation4 + $0x1b0] sm:$0xff]
    %v244 = vld [vmem:[#allocation4 + $0x1b8] sm:$0xff]
    %v245 = vld [vmem:[#allocation4 + $0x1c0] sm:$0xff]
    %v246 = vld [vmem:[#allocation4 + $0x1c8] sm:$0xff]
    %v247 = vld [vmem:[#allocation4 + $0x1d0] sm:$0xff]
    %v248 = vld [vmem:[#allocation4 + $0x1d8] sm:$0xff]
    %v249 = vld [vmem:[#allocation4 + $0x1e0] sm:$0xff]
    %v250 = vld [vmem:[#allocation4 + $0x1e8] sm:$0xff]
    %v251 = vld [vmem:[#allocation4 + $0x1f0] sm:$0xff]
    %v252 = vld [vmem:[#allocation4 + $0x1f8] sm:$0xff]
    %v253 = vld [vmem:[#allocation4 + $0x200] sm:$0xff]
    %v254 = vld [vmem:[#allocation4 + $0x208] sm:$0xff]
    %v255 = vld [vmem:[#allocation4 + $0x210] sm:$0xff]
    %v256 = vld [vmem:[#allocation4 + $0x218] sm:$0xff]
    %v257 = vld [vmem:[#allocation4 + $0x220] sm:$0xff]
    %v258 = vld [vmem:[#allocation4 + $0x228] sm:$0xff]
    %v259 = vld [vmem:[#allocation4 + $0x230] sm:$0xff]
    %v260 = vld [vmem:[#allocation4 + $0x238] sm:$0xff]
    %v261 = vld [vmem:[#allocation4 + $0x240] sm:$0xff]
    %v262 = vld [vmem:[#allocation4 + $0x248] sm:$0xff]
    %v263 = vld [vmem:[#allocation4 + $0x250] sm:$0xff]
    %v264 = vld [vmem:[#allocation4 + $0x258] sm:$0xff]
    %v265 = vld [vmem:[#allocation4 + $0x260] sm:$0xff]
    %v266 = vld [vmem:[#allocation4 + $0x268] sm:$0xff]
    %v267 = vld [vmem:[#allocation4 + $0x270] sm:$0xff]
    %v268 = vld [vmem:[#allocation4 + $0x278] sm:$0xff]
    %v269 = vld [vmem:[#allocation4 + $0x280] sm:$0xff]
    %v270 = vld [vmem:[#allocation4 + $0x288] sm:$0xff]
    %v271 = vld [vmem:[#allocation4 + $0x290] sm:$0xff]
    %v272 = vld [vmem:[#allocation4 + $0x298] sm:$0xff]
    %v273 = vld [vmem:[#allocation4 + $0x2a0] sm:$0xff]
    %v274 = vld [vmem:[#allocation4 + $0x2a8] sm:$0xff]
    %v275 = vld [vmem:[#allocation4 + $0x2b0] sm:$0xff]
    %v276 = vld [vmem:[#allocation4 + $0x2b8] sm:$0xff]
    %v277 = vld [vmem:[#allocation4 + $0x2c0] sm:$0xff]
    %v278 = vld [vmem:[#allocation4 + $0x2c8] sm:$0xff]
    %v279 = vld [vmem:[#allocation4 + $0x2d0] sm:$0xff]
    %v280 = vld [vmem:[#allocation4 + $0x2d8] sm:$0xff]
    %v281 = vld [vmem:[#allocation4 + $0x2e0] sm:$0xff]
    %v282 = vld [vmem:[#allocation4 + $0x2e8] sm:$0xff]
    %v283 = vld [vmem:[#allocation4 + $0x2f0] sm:$0xff]
    %v284 = vld [vmem:[#allocation4 + $0x2f8] sm:$0xff]
    %v285 = vld [vmem:[#allocation4 + $0x300] sm:$0xff]
    %v286 = vld [vmem:[#allocation4 + $0x308] sm:$0xff]
    %v287 = vld [vmem:[#allocation4 + $0x310] sm:$0xff]
    %v288 = vld [vmem:[#allocation4 + $0x318] sm:$0xff]
    %v289 = vld [vmem:[#allocation4 + $0x320] sm:$0xff]
    %v290 = vld [vmem:[#allocation4 + $0x328] sm:$0xff]
    %v291 = vld [vmem:[#allocation4 + $0x330] sm:$0xff]
    %v292 = vld [vmem:[#allocation4 + $0x338] sm:$0xff]
    %v293 = vld [vmem:[#allocation4 + $0x340] sm:$0xff]
    %v294 = vld [vmem:[#allocation4 + $0x348] sm:$0xff]
    %v295 = vld [vmem:[#allocation4 + $0x350] sm:$0xff]
    %v296 = vld [vmem:[#allocation4 + $0x358] sm:$0xff]
    %v297 = vld [vmem:[#allocation4 + $0x360] sm:$0xff]
    %v298 = vld [vmem:[#allocation4 + $0x368] sm:$0xff]
    %v299 = vld [vmem:[#allocation4 + $0x370] sm:$0xff]
    %v300 = vld [vmem:[#allocation4 + $0x378] sm:$0xff]
    %v301 = vld [vmem:[#allocation4 + $0x380] sm:$0xff]
    %v302 = vld [vmem:[#allocation4 + $0x388] sm:$0xff]
    %v303 = vld [vmem:[#allocation4 + $0x390] sm:$0xff]
    %v304 = vld [vmem:[#allocation4 + $0x398] sm:$0xff]
    %v305 = vld [vmem:[#allocation4 + $0x3a0] sm:$0xff]
    %v306 = vld [vmem:[#allocation4 + $0x3a8] sm:$0xff]
    %v307 = vld [vmem:[#allocation4 + $0x3b0] sm:$0xff]
    %v308 = vld [vmem:[#allocation4 + $0x3b8] sm:$0xff]
    %v309 = vld [vmem:[#allocation4 + $0x3c0] sm:$0xff]
    %v310 = vld [vmem:[#allocation4 + $0x3c8] sm:$0xff]
    %v311 = vld [vmem:[#allocation4 + $0x3d0] sm:$0xff]
    %v312 = vld [vmem:[#allocation4 + $0x3d8] sm:$0xff]
    %v313 = vld [vmem:[#allocation4 + $0x3e0] sm:$0xff]
    %v314 = vld [vmem:[#allocation4 + $0x3e8] sm:$0xff]
    %v315 = vld [vmem:[#allocation4 + $0x3f0] sm:$0xff]
    %v316 = vld [vmem:[#allocation4 + $0x3f8] sm:$0xff]
    %v317 = vld [vmem:[%s4] sm:$0xf]
    %v319 = vlaneseq
    %v320 = vshrl.u32 %v319, 7
    %v321 = vsub.s32 0, %v320
    %v322 = vrot.slane %v317, %v321
    %v323 = vlaneseq
    %v324 = vshrl.u32 %v323, 7
    %v325 = vsub.s32 1, %v324
    %v326 = vrot.slane %v317, %v325
    %v327 = vlaneseq
    %v328 = vshrl.u32 %v327, 7
    %v329 = vsub.s32 2, %v328
    %v330 = vrot.slane %v317, %v329
    %v331 = vlaneseq
    %v332 = vshrl.u32 %v331, 7
    %v333 = vsub.s32 3, %v332
    %v334 = vrot.slane %v317, %v333
    %339 = vmatprep.subr.mxu0 %v250
    %340 = vmatpush1.msra.mxu0 %v249
    %341 = vmatprep.subr.mxu0 %v246
    %342 = vmatpush1.msra.mxu0 %v245
    %343 = vmatprep.subr.mxu0 %v242
    %344 = vmatpush1.msra.mxu0 %v241
    %345 = vmatprep.subr.mxu0 %v238
    %346 = vmatpush1.msra.mxu0 %v237
    %347 = vmatprep.subr.mxu0 %v234
    %348 = vmatpush1.msra.mxu0 %v233
    %349 = vmatprep.subr.mxu0 %v230
    %350 = vmatpush1.msra.mxu0 %v229
    %351 = vmatprep.subr.mxu0 %v226
    %352 = vmatpush1.msra.mxu0 %v225
    %353 = vmatprep.subr.mxu0 %v222
    %354 = vmatpush1.msra.mxu0 %v221
    %355 = vmatprep.subr.mxu0 %v218
    %356 = vmatpush1.msra.mxu0 %v217
    %357 = vmatprep.subr.mxu0 %v214
    %358 = vmatpush1.msra.mxu0 %v213
    %359 = vmatprep.subr.mxu0 %v210
    %360 = vmatpush1.msra.mxu0 %v209
    %361 = vmatprep.subr.mxu0 %v206
    %362 = vmatpush1.msra.mxu0 %v205
    %363 = vmatprep.subr.mxu0 %v202
    %364 = vmatpush1.msra.mxu0 %v201
    %365 = vmatprep.subr.mxu0 %v198
    %366 = vmatpush1.msra.mxu0 %v197
    %367 = vmatprep.subr.mxu0 %v194
    %368 = vmatpush1.msra.mxu0 %v193
    %369 = vmatprep.subr.mxu0 %v190
    %370 = vmatpush1.msra.mxu0 %v189
    %371 = vmatprep.subr.mxu0 %v314
    %372 = vmatpush2.msra.mxu0 %v313
    %373 = vmatprep.subr.mxu0 %v310
    %374 = vmatpush2.msra.mxu0 %v309
    %375 = vmatprep.subr.mxu0 %v306
    %376 = vmatpush2.msra.mxu0 %v305
    %377 = vmatprep.subr.mxu0 %v302
    %378 = vmatpush2.msra.mxu0 %v301
    %379 = vmatprep.subr.mxu0 %v298
    %380 = vmatpush2.msra.mxu0 %v297
    %381 = vmatprep.subr.mxu0 %v294
    %382 = vmatpush2.msra.mxu0 %v293
    %383 = vmatprep.subr.mxu0 %v290
    %384 = vmatpush2.msra.mxu0 %v289
    %385 = vmatprep.subr.mxu0 %v286
    %386 = vmatpush2.msra.mxu0 %v285
    %387 = vmatprep.subr.mxu0 %v282
    %388 = vmatpush2.msra.mxu0 %v281
    %389 = vmatprep.subr.mxu0 %v278
    %390 = vmatpush2.msra.mxu0 %v277
    %391 = vmatprep.subr.mxu0 %v274
    %392 = vmatpush2.msra.mxu0 %v273
    %393 = vmatprep.subr.mxu0 %v270
    %394 = vmatpush2.msra.mxu0 %v269
    %395 = vmatprep.subr.mxu0 %v266
    %396 = vmatpush2.msra.mxu0 %v265
    %397 = vmatprep.subr.mxu0 %v262
    %398 = vmatpush2.msra.mxu0 %v261
    %399 = vmatprep.subr.mxu0 %v258
    %400 = vmatpush2.msra.mxu0 %v257
    %401 = vmatprep.subr.mxu0 %v254
    %402 = vmatpush2.msra.mxu0 %v253
    %403 = vmatprep.mubr.f32.mxu0 %v188
    %404 = vmatmul.mubr.f32.gmra.mxu0 %v187
    %v405 = vpop.f32.mrf.mxu0
    %v406 = vadd.f32 %v322, %v405
    %v407 = vpop.f32.mrf.mxu0
    %v408 = vadd.f32 %v326, %v407
    %409 = vdwg.mxu0
    %410 = vmatprep.subr.mxu0 %v252
    %411 = vmatpush1.msra.mxu0 %v251
    %412 = vmatprep.subr.mxu0 %v248
    %413 = vmatpush1.msra.mxu0 %v247
    %414 = vmatprep.subr.mxu0 %v244
    %415 = vmatpush1.msra.mxu0 %v243
    %416 = vmatprep.subr.mxu0 %v240
    %417 = vmatpush1.msra.mxu0 %v239
    %418 = vmatprep.subr.mxu0 %v236
    %419 = vmatpush1.msra.mxu0 %v235
    %420 = vmatprep.subr.mxu0 %v232
    %421 = vmatpush1.msra.mxu0 %v231
    %422 = vmatprep.subr.mxu0 %v228
    %423 = vmatpush1.msra.mxu0 %v227
    %424 = vmatprep.subr.mxu0 %v224
    %425 = vmatpush1.msra.mxu0 %v223
    %426 = vmatprep.subr.mxu0 %v220
    %427 = vmatpush1.msra.mxu0 %v219
    %428 = vmatprep.subr.mxu0 %v216
    %429 = vmatpush1.msra.mxu0 %v215
    %430 = vmatprep.subr.mxu0 %v212
    %431 = vmatpush1.msra.mxu0 %v211
    %432 = vmatprep.subr.mxu0 %v208
    %433 = vmatpush1.msra.mxu0 %v207
    %434 = vmatprep.subr.mxu0 %v204
    %435 = vmatpush1.msra.mxu0 %v203
    %436 = vmatprep.subr.mxu0 %v200
    %437 = vmatpush1.msra.mxu0 %v199
    %438 = vmatprep.subr.mxu0 %v196
    %439 = vmatpush1.msra.mxu0 %v195
    %440 = vmatprep.subr.mxu0 %v192
    %441 = vmatpush1.msra.mxu0 %v191
    %442 = vmatprep.subr.mxu0 %v316
    %443 = vmatpush2.msra.mxu0 %v315
    %444 = vmatprep.subr.mxu0 %v312
    %445 = vmatpush2.msra.mxu0 %v311
    %446 = vmatprep.subr.mxu0 %v308
    %447 = vmatpush2.msra.mxu0 %v307
    %448 = vmatprep.subr.mxu0 %v304
    %449 = vmatpush2.msra.mxu0 %v303
    %450 = vmatprep.subr.mxu0 %v300
    %451 = vmatpush2.msra.mxu0 %v299
    %452 = vmatprep.subr.mxu0 %v296
    %453 = vmatpush2.msra.mxu0 %v295
    %454 = vmatprep.subr.mxu0 %v292
    %455 = vmatpush2.msra.mxu0 %v291
    %456 = vmatprep.subr.mxu0 %v288
    %457 = vmatpush2.msra.mxu0 %v287
    %458 = vmatprep.subr.mxu0 %v284
    %459 = vmatpush2.msra.mxu0 %v283
    %460 = vmatprep.subr.mxu0 %v280
    %461 = vmatpush2.msra.mxu0 %v279
    %462 = vmatprep.subr.mxu0 %v276
    %463 = vmatpush2.msra.mxu0 %v275
    %464 = vmatprep.subr.mxu0 %v272
    %465 = vmatpush2.msra.mxu0 %v271
    %466 = vmatprep.subr.mxu0 %v268
    %467 = vmatpush2.msra.mxu0 %v267
    %468 = vmatprep.subr.mxu0 %v264
    %469 = vmatpush2.msra.mxu0 %v263
    %470 = vmatprep.subr.mxu0 %v260
    %471 = vmatpush2.msra.mxu0 %v259
    %472 = vmatprep.subr.mxu0 %v256
    %473 = vmatpush2.msra.mxu0 %v255
    %474 = vmatprep.mubr.f32.mxu0 %v188
    %475 = vmatmul.mubr.f32.gmra.mxu0 %v187
    %v476 = vpop.f32.mrf.mxu0
    %v477 = vadd.f32 %v330, %v476
    %v478 = vpop.f32.mrf.mxu0
    %v479 = vadd.f32 %v334, %v478
    %480 = vdwg.mxu0
    %v481 = vmax.f32 %v406, 0.0
    %v482 = vmax.f32 %v408, 0.0
    %v483 = vmax.f32 %v477, 0.0
    %v484 = vmax.f32 %v479, 0.0
    %v485 = vld [vmem:[#allocation6] sm:$0xff]
    %v486 = vld [vmem:[#allocation6 + $0x8] sm:$0xff]
    %v487 = vld [vmem:[#allocation6 + $0x10] sm:$0xff]
    %v488 = vld [vmem:[#allocation6 + $0x18] sm:$0xff]
    %v489 = vld [vmem:[#allocation6 + $0x20] sm:$0xff]
    %v490 = vld [vmem:[#allocation6 + $0x28] sm:$0xff]
    %v491 = vld [vmem:[#allocation6 + $0x30] sm:$0xff]
    %v492 = vld [vmem:[#allocation6 + $0x38] sm:$0xff]
    %v493 = vld [vmem:[#allocation6 + $0x40] sm:$0xff]
    %v494 = vld [vmem:[#allocation6 + $0x48] sm:$0xff]
    %v495 = vld [vmem:[#allocation6 + $0x50] sm:$0xff]
    %v496 = vld [vmem:[#allocation6 + $0x58] sm:$0xff]
    %v497 = vld [vmem:[#allocation6 + $0x60] sm:$0xff]
    %v498 = vld [vmem:[#allocation6 + $0x68] sm:$0xff]
    %v499 = vld [vmem:[#allocation6 + $0x70] sm:$0xff]
    %v500 = vld [vmem:[#allocation6 + $0x78] sm:$0xff]
    %v501 = vld [vmem:[#allocation6 + $0x80] sm:$0xff]
    %v502 = vld [vmem:[#allocation6 + $0x88] sm:$0xff]
    %v503 = vld [vmem:[#allocation6 + $0x90] sm:$0xff]
    %v504 = vld [vmem:[#allocation6 + $0x98] sm:$0xff]
    %v505 = vld [vmem:[#allocation6 + $0xa0] sm:$0xff]
    %v506 = vld [vmem:[#allocation6 + $0xa8] sm:$0xff]
    %v507 = vld [vmem:[#allocation6 + $0xb0] sm:$0xff]
    %v508 = vld [vmem:[#allocation6 + $0xb8] sm:$0xff]
    %v509 = vld [vmem:[#allocation6 + $0xc0] sm:$0xff]
    %v510 = vld [vmem:[#allocation6 + $0xc8] sm:$0xff]
    %v511 = vld [vmem:[#allocation6 + $0xd0] sm:$0xff]
    %v512 = vld [vmem:[#allocation6 + $0xd8] sm:$0xff]
    %v513 = vld [vmem:[#allocation6 + $0xe0] sm:$0xff]
    %v514 = vld [vmem:[#allocation6 + $0xe8] sm:$0xff]
    %v515 = vld [vmem:[#allocation6 + $0xf0] sm:$0xff]
    %v516 = vld [vmem:[#allocation6 + $0xf8] sm:$0xff]
    %v517 = vld [vmem:[#allocation6 + $0x100] sm:$0xff]
    %v518 = vld [vmem:[#allocation6 + $0x108] sm:$0xff]
    %v519 = vld [vmem:[#allocation6 + $0x110] sm:$0xff]
    %v520 = vld [vmem:[#allocation6 + $0x118] sm:$0xff]
    %v521 = vld [vmem:[#allocation6 + $0x120] sm:$0xff]
    %v522 = vld [vmem:[#allocation6 + $0x128] sm:$0xff]
    %v523 = vld [vmem:[#allocation6 + $0x130] sm:$0xff]
    %v524 = vld [vmem:[#allocation6 + $0x138] sm:$0xff]
    %v525 = vld [vmem:[#allocation6 + $0x140] sm:$0xff]
    %v526 = vld [vmem:[#allocation6 + $0x148] sm:$0xff]
    %v527 = vld [vmem:[#allocation6 + $0x150] sm:$0xff]
    %v528 = vld [vmem:[#allocation6 + $0x158] sm:$0xff]
    %v529 = vld [vmem:[#allocation6 + $0x160] sm:$0xff]
    %v530 = vld [vmem:[#allocation6 + $0x168] sm:$0xff]
    %v531 = vld [vmem:[#allocation6 + $0x170] sm:$0xff]
    %v532 = vld [vmem:[#allocation6 + $0x178] sm:$0xff]
    %v533 = vld [vmem:[#allocation6 + $0x180] sm:$0xff]
    %v534 = vld [vmem:[#allocation6 + $0x188] sm:$0xff]
    %v535 = vld [vmem:[#allocation6 + $0x190] sm:$0xff]
    %v536 = vld [vmem:[#allocation6 + $0x198] sm:$0xff]
    %v537 = vld [vmem:[#allocation6 + $0x1a0] sm:$0xff]
    %v538 = vld [vmem:[#allocation6 + $0x1a8] sm:$0xff]
    %v539 = vld [vmem:[#allocation6 + $0x1b0] sm:$0xff]
    %v540 = vld [vmem:[#allocation6 + $0x1b8] sm:$0xff]
    %v541 = vld [vmem:[#allocation6 + $0x1c0] sm:$0xff]
    %v542 = vld [vmem:[#allocation6 + $0x1c8] sm:$0xff]
    %v543 = vld [vmem:[#allocation6 + $0x1d0] sm:$0xff]
    %v544 = vld [vmem:[#allocation6 + $0x1d8] sm:$0xff]
    %v545 = vld [vmem:[#allocation6 + $0x1e0] sm:$0xff]
    %v546 = vld [vmem:[#allocation6 + $0x1e8] sm:$0xff]
    %v547 = vld [vmem:[#allocation6 + $0x1f0] sm:$0xff]
    %v548 = vld [vmem:[#allocation6 + $0x1f8] sm:$0xff]
    %v549 = vld [vmem:[%s6] sm:$0x1]
    %v551 = vlaneseq
    %v552 = vshrl.u32 %v551, 7
    %v553 = vsub.s32 0, %v552
    %v554 = vrot.slane %v549, %v553
    %556 = vmatprep.subr.mxu0 0.0
    %557 = vmatpush1.msra.mxu0 %v500
    %558 = vmatprep.subr.mxu0 0.0
    %559 = vmatpush1.msra.mxu0 %v499
    %560 = vmatprep.subr.mxu0 0.0
    %561 = vmatpush1.msra.mxu0 %v498
    %562 = vmatprep.subr.mxu0 0.0
    %563 = vmatpush1.msra.mxu0 %v497
    %564 = vmatprep.subr.mxu0 0.0
    %565 = vmatpush1.msra.mxu0 %v496
    %566 = vmatprep.subr.mxu0 0.0
    %567 = vmatpush1.msra.mxu0 %v495
    %568 = vmatprep.subr.mxu0 0.0
    %569 = vmatpush1.msra.mxu0 %v494
    %570 = vmatprep.subr.mxu0 0.0
    %571 = vmatpush1.msra.mxu0 %v493
    %572 = vmatprep.subr.mxu0 0.0
    %573 = vmatpush1.msra.mxu0 %v492
    %574 = vmatprep.subr.mxu0 0.0
    %575 = vmatpush1.msra.mxu0 %v491
    %576 = vmatprep.subr.mxu0 0.0
    %577 = vmatpush1.msra.mxu0 %v490
    %578 = vmatprep.subr.mxu0 0.0
    %579 = vmatpush1.msra.mxu0 %v489
    %580 = vmatprep.subr.mxu0 0.0
    %581 = vmatpush1.msra.mxu0 %v488
    %582 = vmatprep.subr.mxu0 0.0
    %583 = vmatpush1.msra.mxu0 %v487
    %584 = vmatprep.subr.mxu0 0.0
    %585 = vmatpush1.msra.mxu0 %v486
    %586 = vmatprep.subr.mxu0 0.0
    %587 = vmatpush1.msra.mxu0 %v485
    %588 = vmatprep.subr.mxu0 0.0
    %589 = vmatpush2.msra.mxu0 %v516
    %590 = vmatprep.subr.mxu0 0.0
    %591 = vmatpush2.msra.mxu0 %v515
    %592 = vmatprep.subr.mxu0 0.0
    %593 = vmatpush2.msra.mxu0 %v514
    %594 = vmatprep.subr.mxu0 0.0
    %595 = vmatpush2.msra.mxu0 %v513
    %596 = vmatprep.subr.mxu0 0.0
    %597 = vmatpush2.msra.mxu0 %v512
    %598 = vmatprep.subr.mxu0 0.0
    %599 = vmatpush2.msra.mxu0 %v511
    %600 = vmatprep.subr.mxu0 0.0
    %601 = vmatpush2.msra.mxu0 %v510
    %602 = vmatprep.subr.mxu0 0.0
    %603 = vmatpush2.msra.mxu0 %v509
    %604 = vmatprep.subr.mxu0 0.0
    %605 = vmatpush2.msra.mxu0 %v508
    %606 = vmatprep.subr.mxu0 0.0
    %607 = vmatpush2.msra.mxu0 %v507
    %608 = vmatprep.subr.mxu0 0.0
    %609 = vmatpush2.msra.mxu0 %v506
    %610 = vmatprep.subr.mxu0 0.0
    %611 = vmatpush2.msra.mxu0 %v505
    %612 = vmatprep.subr.mxu0 0.0
    %613 = vmatpush2.msra.mxu0 %v504
    %614 = vmatprep.subr.mxu0 0.0
    %615 = vmatpush2.msra.mxu0 %v503
    %616 = vmatprep.subr.mxu0 0.0
    %617 = vmatpush2.msra.mxu0 %v502
    %618 = vmatprep.subr.mxu0 0.0
    %619 = vmatpush2.msra.mxu0 %v501
    %620 = vmatprep.mubr.f32.mxu0 %v482
    %621 = vmatmul.mubr.f32.gmra.mxu0 %v481
    %v622 = vpop.f32.mrf.mxu0
    %v623 = vadd.f32 %v554, %v622
    %v624 = vpop.f32.mrf.mxu0
    %625 = vdwg.mxu0
    %626 = vmatprep.subr.mxu0 0.0
    %627 = vmatpush1.msra.mxu0 %v532
    %628 = vmatprep.subr.mxu0 0.0
    %629 = vmatpush1.msra.mxu0 %v531
    %630 = vmatprep.subr.mxu0 0.0
    %631 = vmatpush1.msra.mxu0 %v530
    %632 = vmatprep.subr.mxu0 0.0
    %633 = vmatpush1.msra.mxu0 %v529
    %634 = vmatprep.subr.mxu0 0.0
    %635 = vmatpush1.msra.mxu0 %v528
    %636 = vmatprep.subr.mxu0 0.0
    %637 = vmatpush1.msra.mxu0 %v527
    %638 = vmatprep.subr.mxu0 0.0
    %639 = vmatpush1.msra.mxu0 %v526
    %640 = vmatprep.subr.mxu0 0.0
    %641 = vmatpush1.msra.mxu0 %v525
    %642 = vmatprep.subr.mxu0 0.0
    %643 = vmatpush1.msra.mxu0 %v524
    %644 = vmatprep.subr.mxu0 0.0
    %645 = vmatpush1.msra.mxu0 %v523
    %646 = vmatprep.subr.mxu0 0.0
    %647 = vmatpush1.msra.mxu0 %v522
    %648 = vmatprep.subr.mxu0 0.0
    %649 = vmatpush1.msra.mxu0 %v521
    %650 = vmatprep.subr.mxu0 0.0
    %651 = vmatpush1.msra.mxu0 %v520
    %652 = vmatprep.subr.mxu0 0.0
    %653 = vmatpush1.msra.mxu0 %v519
    %654 = vmatprep.subr.mxu0 0.0
    %655 = vmatpush1.msra.mxu0 %v518
    %656 = vmatprep.subr.mxu0 0.0
    %657 = vmatpush1.msra.mxu0 %v517
    %658 = vmatprep.subr.mxu0 0.0
    %659 = vmatpush2.msra.mxu0 %v548
    %660 = vmatprep.subr.mxu0 0.0
    %661 = vmatpush2.msra.mxu0 %v547
    %662 = vmatprep.subr.mxu0 0.0
    %663 = vmatpush2.msra.mxu0 %v546
    %664 = vmatprep.subr.mxu0 0.0
    %665 = vmatpush2.msra.mxu0 %v545
    %666 = vmatprep.subr.mxu0 0.0
    %667 = vmatpush2.msra.mxu0 %v544
    %668 = vmatprep.subr.mxu0 0.0
    %669 = vmatpush2.msra.mxu0 %v543
    %670 = vmatprep.subr.mxu0 0.0
    %671 = vmatpush2.msra.mxu0 %v542
    %672 = vmatprep.subr.mxu0 0.0
    %673 = vmatpush2.msra.mxu0 %v541
    %674 = vmatprep.subr.mxu0 0.0
    %675 = vmatpush2.msra.mxu0 %v540
    %676 = vmatprep.subr.mxu0 0.0
    %677 = vmatpush2.msra.mxu0 %v539
    %678 = vmatprep.subr.mxu0 0.0
    %679 = vmatpush2.msra.mxu0 %v538
    %680 = vmatprep.subr.mxu0 0.0
    %681 = vmatpush2.msra.mxu0 %v537
    %682 = vmatprep.subr.mxu0 0.0
    %683 = vmatpush2.msra.mxu0 %v536
    %684 = vmatprep.subr.mxu0 0.0
    %685 = vmatpush2.msra.mxu0 %v535
    %686 = vmatprep.subr.mxu0 0.0
    %687 = vmatpush2.msra.mxu0 %v534
    %688 = vmatprep.subr.mxu0 0.0
    %689 = vmatpush2.msra.mxu0 %v533
    %690 = vmatprep.mubr.f32.mxu0 %v484
    %691 = vmatmul.mubr.f32.gmra.mxu0 %v483
    %v692 = vpop.f32.mrf.mxu0
    %v693 = vadd.f32 %v623, %v692
    %v694 = vpop.f32.mrf.mxu0
    %695 = vdwg.mxu0
    %v696 = vmax.f32 %v693, 0.0
    %v697 = vld [vmem:[#allocation7] sm:$0xff]
    %v698 = vld [vmem:[#allocation7 + $0x8] sm:$0xff]
    %v699 = vld [vmem:[#allocation7 + $0x10] sm:$0xff]
    %v700 = vld [vmem:[#allocation7 + $0x18] sm:$0xff]
    %v701 = vld [vmem:[#allocation7 + $0x20] sm:$0xff]
    %v702 = vld [vmem:[#allocation7 + $0x28] sm:$0xff]
    %v703 = vld [vmem:[#allocation7 + $0x30] sm:$0xff]
    %v704 = vld [vmem:[#allocation7 + $0x38] sm:$0xff]
    %v705 = vld [vmem:[#allocation7 + $0x40] sm:$0xff]
    %v706 = vld [vmem:[#allocation7 + $0x48] sm:$0xff]
    %v707 = vld [vmem:[#allocation7 + $0x50] sm:$0xff]
    %v708 = vld [vmem:[#allocation7 + $0x58] sm:$0xff]
    %v709 = vld [vmem:[#allocation7 + $0x60] sm:$0xff]
    %v710 = vld [vmem:[#allocation7 + $0x68] sm:$0xff]
    %v711 = vld [vmem:[#allocation7 + $0x70] sm:$0xff]
    %v712 = vld [vmem:[#allocation7 + $0x78] sm:$0xff]
    %v713 = vld [vmem:[%s8] sm:$0x1]
    %v715 = vlaneseq
    %v716 = vshrl.u32 %v715, 7
    %v717 = vsub.s32 0, %v716
    %v718 = vrot.slane %v713, %v717
    %720 = vmatprep.subr.mxu0 0.0
    %721 = vmatpush1.msra.mxu0 %v712
    %722 = vmatprep.subr.mxu0 0.0
    %723 = vmatpush1.msra.mxu0 %v711
    %724 = vmatprep.subr.mxu0 0.0
    %725 = vmatpush1.msra.mxu0 %v710
    %726 = vmatprep.subr.mxu0 0.0
    %727 = vmatpush1.msra.mxu0 %v709
    %728 = vmatprep.subr.mxu0 0.0
    %729 = vmatpush1.msra.mxu0 %v708
    %730 = vmatprep.subr.mxu0 0.0
    %731 = vmatpush1.msra.mxu0 %v707
    %732 = vmatprep.subr.mxu0 0.0
    %733 = vmatpush1.msra.mxu0 %v706
    %734 = vmatprep.subr.mxu0 0.0
    %735 = vmatpush1.msra.mxu0 %v705
    %736 = vmatprep.subr.mxu0 0.0
    %737 = vmatpush1.msra.mxu0 %v704
    %738 = vmatprep.subr.mxu0 0.0
    %739 = vmatpush1.msra.mxu0 %v703
    %740 = vmatprep.subr.mxu0 0.0
    %741 = vmatpush1.msra.mxu0 %v702
    %742 = vmatprep.subr.mxu0 0.0
    %743 = vmatpush1.msra.mxu0 %v701
    %744 = vmatprep.subr.mxu0 0.0
    %745 = vmatpush1.msra.mxu0 %v700
    %746 = vmatprep.subr.mxu0 0.0
    %747 = vmatpush1.msra.mxu0 %v699
    %748 = vmatprep.subr.mxu0 0.0
    %749 = vmatpush1.msra.mxu0 %v698
    %750 = vmatprep.subr.mxu0 0.0
    %751 = vmatpush1.msra.mxu0 %v697
    %752 = vmatprep.subr.mxu0 0.0
    %753 = vmatpush2.msra.mxu0 0.0
    %754 = vmatprep.subr.mxu0 0.0
    %755 = vmatpush2.msra.mxu0 0.0
    %756 = vmatprep.subr.mxu0 0.0
    %757 = vmatpush2.msra.mxu0 0.0
    %758 = vmatprep.subr.mxu0 0.0
    %759 = vmatpush2.msra.mxu0 0.0
    %760 = vmatprep.subr.mxu0 0.0
    %761 = vmatpush2.msra.mxu0 0.0
    %762 = vmatprep.subr.mxu0 0.0
    %763 = vmatpush2.msra.mxu0 0.0
    %764 = vmatprep.subr.mxu0 0.0
    %765 = vmatpush2.msra.mxu0 0.0
    %766 = vmatprep.subr.mxu0 0.0
    %767 = vmatpush2.msra.mxu0 0.0
    %768 = vmatprep.subr.mxu0 0.0
    %769 = vmatpush2.msra.mxu0 0.0
    %770 = vmatprep.subr.mxu0 0.0
    %771 = vmatpush2.msra.mxu0 0.0
    %772 = vmatprep.subr.mxu0 0.0
    %773 = vmatpush2.msra.mxu0 0.0
    %774 = vmatprep.subr.mxu0 0.0
    %775 = vmatpush2.msra.mxu0 0.0
    %776 = vmatprep.subr.mxu0 0.0
    %777 = vmatpush2.msra.mxu0 0.0
    %778 = vmatprep.subr.mxu0 0.0
    %779 = vmatpush2.msra.mxu0 0.0
    %780 = vmatprep.subr.mxu0 0.0
    %781 = vmatpush2.msra.mxu0 0.0
    %782 = vmatprep.subr.mxu0 0.0
    %783 = vmatpush2.msra.mxu0 0.0
    %784 = vmatprep.mubr.f32.mxu0 0.0
    %785 = vmatmul.mubr.f32.gmra.mxu0 %v696
    %v786 = vpop.f32.mrf.mxu0
    %v787 = vadd.f32 %v718, %v786
    %v788 = vpop.f32.mrf.mxu0
    %789 = vdwg.mxu0
    %790 = vst [vmem:[%s9] sm:$0xff] %v787
    // Predicated region
    $region54: #{dqn_forward.1} parent=1 // pred_check
      _
    $region55: #{dqn_forward.1} parent=1 // pred_check_branch
      %792 = sbr.rel (0) target = $region57
    $region56: #{dqn_forward.1} parent=1 // pred_region
      _
    $region57: #{dqn_forward.1} parent=1 // pred_fallthru
      _
    // Predicated region
    $region58: #{dqn_forward.1} parent=1 // pred_check
      _
    $region59: #{dqn_forward.1} parent=1 // pred_check_branch
      %794 = sbr.rel (0) target = $region61
    $region60: #{dqn_forward.1} parent=1 // pred_region
      _
    $region61: #{dqn_forward.1} parent=1 // pred_fallthru
      _
    %795 = vsyncpa [#allocation3], 1
    %796 = vsyncpa [#allocation5], 1
    %797 = vsyncpa [#allocation8], 1

</llo_original>
